<compile_context>
chip_gen: v6e
topology: v6e:2x2x1
jax: 0.10.0
libtpu: 0.0.40
codegen_flags: <defaults>
</compile_context>

<pallas_src>
import functools

import jax
import jax.numpy as jnp
from jax.experimental import pallas as pl
from jax.experimental.pallas import tpu as pltpu


# ---------------------------------------------------------------------------
# Kernels
# ---------------------------------------------------------------------------
def _lse_kernel_single(pred_ref, out_ref, *, n_rows, tile_n):
    """One class tile (grid_c == 1): direct logsumexp, no online-softmax scratch."""
    i = pl.program_id(0)
    x = pred_ref[...].astype(jnp.float32)                    # (tile_n, C) f32
    m = jnp.max(x, axis=-1, keepdims=True)                   # (tile_n, 1)
    l = jnp.sum(jnp.exp(x - m), axis=-1, keepdims=True)      # (tile_n, 1)
    per_row = jnp.log(l) + m                                  # row logsumexp
    if n_rows % tile_n != 0:
        # Row remainder of the last batch tile: select (NaN-safe) before summing.
        row = i * tile_n + jax.lax.broadcasted_iota(jnp.int32, (tile_n, 1), 0)
        per_row = jnp.where(row < n_rows, per_row, 0.0)
    partial = jnp.sum(per_row, keepdims=True)                 # (1, 1)
    # Lane-dense (8, 128) partial-sum block -> unmasked full-tile store.
    out_ref[...] = jnp.broadcast_to(partial, (8, 128))


def _lse_kernel_multi(pred_ref, out_ref, m_sc, l_sc, *,
                      n_rows, n_cols, tile_n, tile_c):
    """grid_c > 1: flash-style online logsumexp across class tiles."""
    i = pl.program_id(0)          # batch-tile index ("parallel")
    k = pl.program_id(1)          # class-tile index ("arbitrary" reduction axis)
    nk = pl.num_programs(1)

    @pl.when(k == 0)
    def _():
        m_sc[...] = jnp.full_like(m_sc, -jnp.inf)
        l_sc[...] = jnp.zeros_like(l_sc)

    def update(masked):
        x = pred_ref[...].astype(jnp.float32)                 # (tile_n, tile_c) f32
        if masked:
            # (1, tile_c) iota; compares broadcast over rows (no tile-sized iota).
            col = k * tile_c + jax.lax.broadcasted_iota(jnp.int32, (1, tile_c), 1)
            valid = col < n_cols
            blk_max = jnp.max(jnp.where(valid, x, -jnp.inf), axis=-1, keepdims=True)
        else:
            blk_max = jnp.max(x, axis=-1, keepdims=True)
        m_prev = m_sc[...]
        m_new = jnp.maximum(m_prev, blk_max)
        alpha = jnp.exp(m_prev - m_new)                        # (tile_n, 1)
        e = jnp.exp(x - m_new)
        if masked:
            e = jnp.where(valid, e, 0.0)                       # NaN-safe select
        blk_sum = jnp.sum(e, axis=-1, keepdims=True)
        l_sc[...] = alpha * l_sc[...] + blk_sum
        m_sc[...] = m_new

    if n_cols % tile_c != 0:
        # Only the last class tile has padded columns; interior tiles run unmasked.
        @pl.when(k < nk - 1)
        def _():
            update(masked=False)

        @pl.when(k == nk - 1)
        def _():
            update(masked=True)
    else:
        update(masked=False)

    @pl.when(k == nk - 1)
    def _():
        per_row = jnp.log(l_sc[...]) + m_sc[...]               # (tile_n, 1) lse
        if n_rows % tile_n != 0:
            row = i * tile_n + jax.lax.broadcasted_iota(jnp.int32, (tile_n, 1), 0)
            per_row = jnp.where(row < n_rows, per_row, 0.0)
        partial = jnp.sum(per_row, keepdims=True)              # (1, 1)
        out_ref[...] = jnp.broadcast_to(partial, (8, 128))


# ---------------------------------------------------------------------------
# Tile / chip heuristics
# ---------------------------------------------------------------------------
_TILE_BYTE_BUDGET = 8 * 1024 * 1024   # pred tile bytes (double-buffered -> 16 MiB)
_MAX_TILE_N = 2048                    # keeps (tile_n,1) lane-padded scratch ~1 MiB
_MAX_TILE_C = 2048                    # multiple of 128; long contiguous HBM runs


def _chip_params():
    """Returns (num_batch_cores, vmem_limit_bytes) from the device generation."""
    kind = ""
    try:
        kind = jax.devices()[0].device_kind.lower()
    except Exception:
        pass
    if any(g in kind for g in ("v2", "v3", "v4", "v5", "v6")):
        # Single Pallas TensorCore; 128 MiB physical VMEM -> allow bigger scoped limit.
        return 1, 64 * 1024 * 1024
    # v7x (2 TensorCores/chip, 64 MiB physical VMEM) and unknown/future parts.
    return 2, 40 * 1024 * 1024


def _choose_tiles(n, c, itemsize, num_cores):
    tile_c = c if c <= _MAX_TILE_C else _MAX_TILE_C
    rows = _TILE_BYTE_BUDGET // max(1, tile_c * itemsize)
    rows = max(8, min(_MAX_TILE_N, (rows // 8) * 8))
    if n <= 8:
        return n, tile_c                       # full batch dim (legal even if < 8)
    tile_n = min(rows, (n // 8) * 8)
    if num_cores > 1 and n >= 16:
        # Keep >= num_cores batch tiles so the "parallel" axis spans both TCs.
        cap = max(8, ((pl.cdiv(n, num_cores) + 7) // 8) * 8)
        tile_n = min(tile_n, cap)
    return tile_n, tile_c


# ---------------------------------------------------------------------------
# Wrapper
# ---------------------------------------------------------------------------
def id_class_loss(pred, target):
    """Mean cross-entropy over the batch (PyTorch nn.CrossEntropyLoss semantics).

    pred:   (N, C) float logits (f32 or bf16)
    target: (N,)   int class indices in [0, C)
    returns scalar float32 loss
    """
    n, c = pred.shape
    itemsize = jnp.dtype(pred.dtype).itemsize
    tgt = target.astype(jnp.int32)
    # TODO(synk): PyTorch's ignore_index (-100) handling is not implemented;
    # targets are assumed to all be valid class indices.

    # Target-logit pick done once in the wrapper (N values, negligible vs the
    # N*C logit stream):  loss = (sum_i lse_i - sum_i pred[i, target_i]) / N.
    pick_sum = jnp.sum(
        jnp.take_along_axis(pred, tgt[:, None], axis=1).astype(jnp.float32))

    num_cores, vmem_limit = _chip_params()
    tile_n, tile_c = _choose_tiles(n, c, itemsize, num_cores)
    grid_n = pl.cdiv(n, tile_n)
    grid_c = pl.cdiv(c, tile_c)

    out_shape = jax.ShapeDtypeStruct((8, 128 * grid_n), jnp.float32)

    if grid_c == 1:
        kernel = functools.partial(_lse_kernel_single, n_rows=n, tile_n=tile_n)
        grid_spec = pltpu.PrefetchScalarGridSpec(
            num_scalar_prefetch=0,
            grid=(grid_n,),
            in_specs=[pl.BlockSpec((tile_n, tile_c), lambda i: (i, 0))],
            out_specs=pl.BlockSpec((8, 128), lambda i: (0, i)),
        )
        dim_sem = ("parallel",)
    else:
        kernel = functools.partial(_lse_kernel_multi, n_rows=n, n_cols=c,
                                   tile_n=tile_n, tile_c=tile_c)
        grid_spec = pltpu.PrefetchScalarGridSpec(
            num_scalar_prefetch=0,
            grid=(grid_n, grid_c),
            in_specs=[pl.BlockSpec((tile_n, tile_c), lambda i, k: (i, k))],
            out_specs=pl.BlockSpec((8, 128), lambda i, k: (0, i)),
            scratch_shapes=[
                pltpu.VMEM((tile_n, 1), jnp.float32),   # running max m
                pltpu.VMEM((tile_n, 1), jnp.float32),   # running sum l
            ],
        )
        dim_sem = ("parallel", "arbitrary")

    out = pl.pallas_call(
        kernel,
        out_shape=out_shape,
        grid_spec=grid_spec,
        compiler_params=pltpu.CompilerParams(
            dimension_semantics=dim_sem,
            vmem_limit_bytes=vmem_limit,
        ),
        cost_estimate=pl.CostEstimate(
            flops=4 * n * c,
            transcendentals=n * c,
            bytes_accessed=n * c * itemsize + 8 * 128 * grid_n * 4,
        ),
    )(pred)

    lse_sum = jnp.sum(out[0, 0::128])       # one partial lse-sum per batch tile
    return (lse_sum - pick_sum) / n


# ---------------------------------------------------------------------------
# Reference + tests
# ---------------------------------------------------------------------------
def _reference(pred, target):
    logp = jax.nn.log_softmax(pred.astype(jnp.float32), axis=-1)
    return -jnp.mean(logp[jnp.arange(pred.shape[0]), target])


if __name__ == "__main__":
    key = jax.random.PRNGKey(0)
    k1, k2, k3, k4, k5, k6, k7, k8 = jax.random.split(key, 8)

    # Primary small example (batch=8 samples, 32 identity classes).
    N, C = 8, 32
    pred = jax.random.normal(k1, (N, C), dtype=jnp.float32)
    target = jax.random.randint(k2, (N,), 0, C, dtype=jnp.int32)
    loss = id_class_loss(pred, target)
    jax.block_until_ready(loss)
    assert jnp.allclose(loss, _reference(pred, target), atol=1e-5, rtol=1e-5), (
        loss, _reference(pred, target))

    # Row-remainder masking + multiple batch tiles (grid_n > 1), single class tile.
    N2, C2 = 37, 300
    pred2 = jax.random.normal(k3, (N2, C2), dtype=jnp.float32)
    target2 = jax.random.randint(k4, (N2,), 0, C2, dtype=jnp.int32)
    loss2 = id_class_loss(pred2, target2)
    jax.block_until_ready(loss2)
    assert jnp.allclose(loss2, _reference(pred2, target2), atol=1e-4, rtol=1e-4), (
        loss2, _reference(pred2, target2))

    # Class-axis tiling + online logsumexp (grid_c > 1, column remainder).
    N3, C3 = 16, 2100
    pred3 = jax.random.normal(k5, (N3, C3), dtype=jnp.float32)
    target3 = jax.random.randint(k6, (N3,), 0, C3, dtype=jnp.int32)
    loss3 = id_class_loss(pred3, target3)
    jax.block_until_ready(loss3)
    assert jnp.allclose(loss3, _reference(pred3, target3), atol=1e-4, rtol=1e-4), (
        loss3, _reference(pred3, target3))

    # bf16 logits (elementwise math runs in f32 inside the kernel).
    N4, C4 = 32, 512
    pred4 = jax.random.normal(k7, (N4, C4), dtype=jnp.bfloat16)
    target4 = jax.random.randint(k8, (N4,), 0, C4, dtype=jnp.int32)
    loss4 = id_class_loss(pred4, target4)
    jax.block_until_ready(loss4)
    assert jnp.allclose(loss4, _reference(pred4, target4), atol=2e-2, rtol=2e-2), (
        loss4, _reference(pred4, target4))

    print("KERNEL_OK")
</pallas_src>

<mosaic_0001>
module attributes {stable_mosaic.version = 11 : i64} {
  func.func @_lse_kernel_single(%arg0: i32, %arg1: memref<8x32xf32, #tpu.memory_space<vmem>>, %arg2: memref<8x128xf32, #tpu.memory_space<vmem>>) attributes {dimension_semantics = [#tpu.dimension_semantics<parallel>], iteration_bounds = array<i64: 1>, scalar_prefetch = 0 : i64, scratch_operands = 0 : i64, tpu.core_type = #tpu.core_type<tc>, window_params = [{transform_indices = @transform_0, window_bounds = array<i64: 8, 32>}, {transform_indices = @transform_1, window_bounds = array<i64: 8, 128>}]} {
    %c0 = arith.constant 0 : index
    %c0_0 = arith.constant 0 : index
    %0 = vector.load %arg1[%c0, %c0_0] : memref<8x32xf32, #tpu.memory_space<vmem>>, vector<8x32xf32>
    %cst = arith.constant dense<0xFF800000> : vector<8xf32>
    %1 = vector.multi_reduction <maximumf>, %0, %cst [1] : vector<8x32xf32> to vector<8xf32>
    %2 = vector.shape_cast %1 : vector<8xf32> to vector<8x1xf32>
    %3 = vector.broadcast %2 : vector<8x1xf32> to vector<8x32xf32>
    %4 = arith.subf %0, %3 : vector<8x32xf32>
    %5 = math.exp %4 : vector<8x32xf32>
    %cst_1 = arith.constant dense<0.000000e+00> : vector<8xf32>
    %6 = vector.multi_reduction <add>, %5, %cst_1 [1] : vector<8x32xf32> to vector<8xf32>
    %7 = vector.shape_cast %6 : vector<8xf32> to vector<8x1xf32>
    %8 = math.log %7 : vector<8x1xf32>
    %9 = arith.addf %8, %2 : vector<8x1xf32>
    %10 = vector.shape_cast %9 : vector<8x1xf32> to vector<1x8x1xf32>
    %cst_2 = arith.constant dense<0.000000e+00> : vector<1xf32>
    %11 = vector.multi_reduction <add>, %10, %cst_2 [1, 2] : vector<1x8x1xf32> to vector<1xf32>
    %12 = vector.shape_cast %11 : vector<1xf32> to vector<1x1x1xf32>
    %13 = vector.extract %12[0, 0, 0] : f32 from vector<1x1x1xf32>
    %14 = vector.broadcast %13 : f32 to vector<1x1xf32>
    %15 = vector.shape_cast %14 : vector<1x1xf32> to vector<1x1xf32>
    %16 = vector.broadcast %15 : vector<1x1xf32> to vector<8x128xf32>
    %c0_3 = arith.constant 0 : index
    %c0_4 = arith.constant 0 : index
    %17 = vector.load %arg2[%c0_3, %c0_4] : memref<8x128xf32, #tpu.memory_space<vmem>>, vector<8x128xf32>
    tpu.vector_store %arg2[%c0_3, %c0_4], %16 {strides = array<i32>} : memref<8x128xf32, #tpu.memory_space<vmem>>, vector<8x128xf32>,
    return
  }
  func.func @transform_0(%arg0: i32) -> (i32, i32) {
    %c0_i32 = arith.constant 0 : i32
    %c0_i32_0 = arith.constant 0 : i32
    return %arg0, %c0_i32 : i32, i32
  }
  func.func @transform_1(%arg0: i32) -> (i32, i32) {
    %c0_i32 = arith.constant 0 : i32
    %c0_i32_0 = arith.constant 0 : i32
    return %c0_i32, %arg0 : i32, i32
  }
}

</mosaic_0001>

<llo_original>
// kernel: tpu_custom_call.1
$region0: #{tpu_custom_call.1}
  #allocation0 [shape = 'u32[]', space=smem, size = 0x4, offset = 0x4, fixed_abs, tag = 'smem constant byte address 0x4 - core index']
  #allocation1 [shape = 'u32[144,128]{1,0:T(1,128)}', space=vmem, size = 0x12000, scoped, tag = 'internal scratch']
  %s0 = inlined_call_operand.hbm [shape: f32[8,32], index: 0, kind: input, shape index: {}]
  %s1 = inlined_call_operand.hbm [shape: f32[8,128], index: 1, kind: output, shape index: {}]
  %s2 = sld [smem:[#allocation0]]
  $region18: #{tpu_custom_call.1} parent=0
    _
  %s4 = ssub.s32 1, %s2
  %s5 = scalar_select 0, %s4, %s2
  $region1: #{tpu_custom_call.1} parent=0
    #allocation2 [shape = 'u8[4096]{0}', space=vmem, size = 0x1000, scoped, tag = 'input window, operand 0, single buffered']
    #allocation3 [shape = 's32[1]{0}', space=sflag, size = 0x4, scoped, tag = 'scoped memory for tpu_custom_call.1']
    #allocation4 [shape = 's32[1]{0}', space=sflag, size = 0x4, scoped, tag = 'scoped memory for tpu_custom_call.1']
    #allocation5 [shape = 'u8[4096]{0}', space=vmem, size = 0x1000, scoped, tag = 'output window, operand 0, single buffered']
    %6 = vsyncpa [#allocation3], 0
    %7 = vsyncpa [#allocation4], 0
    // Predicated region
    $region2: #{tpu_custom_call.1} parent=1 // pred_check
      _
    $region3: #{tpu_custom_call.1} parent=1 // pred_check_branch
      %9 = sbr.rel (0) target = $region5
    $region4: #{tpu_custom_call.1} parent=1 // pred_region
      %s11 = ssub.s32 128, 128
      %12 = vsyncadd [#allocation3], %s11
      %s14 = sshll.u32 [#allocation2], 4
      %s15 = int_to_ptr.vmem [resolvable:$true] %s14
      %17 = dma.hbm_to_vmem [thread:$0]  %s0, 128, %s15, [#allocation3]
    $region5: #{tpu_custom_call.1} parent=1 // pred_fallthru
      _
    // Predicated region
    $region6: #{tpu_custom_call.1} parent=1 // pred_check
      _
    $region7: #{tpu_custom_call.1} parent=1 // pred_check_branch
      %19 = sbr.rel (0) target = $region9
    $region8: #{tpu_custom_call.1} parent=1 // pred_region
      %20 = dma.done [#allocation3], 128
    $region9: #{tpu_custom_call.1} parent=1 // pred_fallthru
      _
    %v21 = vld [vmem:[#allocation2] sm:$0xff]
    %vm22 = vcmask 261120
    %v23 = vsel %vm22, %v21, -inf
    %24 = vmax.xlane.f32.xlu0 %v23
    %v25 = vpop.xlane.xlu0 %24
    %v26 = vsub.f32 %v21, %v25
    %v27 = vmul.f32 %v26, 1.442695
    %v28 = vpow.pop %v27
    %v29 = vsel %vm22, %v28, 0.0
    %30 = vadd.xlane.f32.xlu0 %v29
    %v31 = vpop.xlane.xlu0 %30
    %v32 = vlog2.pop %v31
    %v33 = vmul.f32 %v32, 0.6931472
    %v34 = vadd.f32 %v33, %v25
    %vm35 = vcmask 7168
    %v36 = vsel %vm35, %v34, 0.0
    %37 = vadd.xlane.f32.xlu0 %v36
    %v38 = vpop.xlane.xlu0 %37
    %v39 = vrot.slane %v38, 4
    %v40 = vadd.f32 %v38, %v39
    %v41 = vrot.slane %v40, 2
    %v42 = vadd.f32 %v40, %v41
    %v43 = vrot.slane %v42, 1
    %v44 = vadd.f32 %v42, %v43
    %s45 = vtos %v44
    %v46 = vstv %s45
    %47 = vst [vmem:[#allocation5] sm:$0xff] %v46
    // Predicated region
    $region10: #{tpu_custom_call.1} parent=1 // pred_check
      _
    $region11: #{tpu_custom_call.1} parent=1 // pred_check_branch
      %49 = sbr.rel (0) target = $region13
    $region12: #{tpu_custom_call.1} parent=1 // pred_region
      %s51 = ssub.s32 128, 128
      %52 = vsyncadd [#allocation4], %s51
      %s54 = sshll.u32 [#allocation5], 4
      %s55 = int_to_ptr.vmem [resolvable:$true] %s54
      %57 = dma.vmem_to_hbm [thread:$0]  %s55, 128, %s1, [#allocation4]
    $region13: #{tpu_custom_call.1} parent=1 // pred_fallthru
      _
    // Predicated region
    $region14: #{tpu_custom_call.1} parent=1 // pred_check
      _
    $region15: #{tpu_custom_call.1} parent=1 // pred_check_branch
      %59 = sbr.rel (0) target = $region17
    $region16: #{tpu_custom_call.1} parent=1 // pred_region
      %60 = dma.done [#allocation4], 128
    $region17: #{tpu_custom_call.1} parent=1 // pred_fallthru
      _
    %61 = vsyncpa [#allocation3], 1
    %62 = vsyncpa [#allocation4], 1

</llo_original>
